<compile_context>
chip_gen: v7x
topology: tpu7x:2x2x1
jax: 0.10.0
libtpu: 0.0.40
codegen_flags: <defaults>
</compile_context>

<pallas_src>
import jax
import jax.numpy as jnp
import numpy as np
from jax import lax
from jax.experimental import pallas as pl
from jax.experimental.pallas import tpu as pltpu


def _round_up(x, m):
    return ((x + m - 1) // m) * m


def prepare_params(weight, bias, matmul_dtype=jnp.bfloat16):
    """One-time parameter prep (hoisted out of the per-call path).

    weight: (D, D) PyTorch nn.Linear layout (out, in), i.e. y = x @ W.T + b.
    Returns (w_t, b_row): pre-transposed weight in the MXU dtype and bias as (1, D) f32.
    (self.w2 of the PyTorch module is never used in forward, so it is not represented.)
    """
    w_t = jnp.asarray(weight).T.astype(matmul_dtype)           # (in, out) = (D, D)
    b_row = jnp.asarray(bias).reshape(1, -1).astype(jnp.float32)
    return w_t, b_row


def contrastive_loss_rec3(A_is_t, A_em_t, m, tr_m, w_t, b_row, *,
                          margin=0.0, tile_b=512, num_batch_partitions=2):
    """Pallas equivalent of ContrastiveLoss_rec3.forward. Returns shape (1,) float32."""
    B, D = m.shape
    matmul_dtype = w_t.dtype

    # Diagonal A[i, i, :] via a strided slice (touches only B*D elements; no gather).
    a_is_diag = A_is_t.reshape(B * B, D)[:: B + 1]
    a_em_diag = A_em_t.reshape(B * B, D)[:: B + 1]

    # --- batch tiling: no padded HBM copies; ragged last tile masked in-kernel.
    tile = min(tile_b, _round_up(B, 8))
    n_row_tiles = pl.cdiv(B, tile)
    # Largest partition count <= requested that divides n_row_tiles (avoids fully-empty
    # partitions); gives a leading "parallel" axis so v7x's 2 TensorCores can split B.
    n_par = max(d for d in range(1, max(1, num_batch_partitions) + 1)
                if n_row_tiles % d == 0)
    tiles_per_part = n_row_tiles // n_par
    grid = (n_par, tiles_per_part)

    def kernel(m_ref, trm_ref, ais_ref, aem_ref, w_ref, b_ref, out_ref):
        p = pl.program_id(0)
        j = pl.program_id(1)

        @pl.when(j == 0)
        def _init():
            out_ref[...] = jnp.zeros_like(out_ref)

        # Fused prep on the VPU (f32; free filler under the DMA/MXU).
        mc = (0.2 * m_ref[...].astype(jnp.float32)
              + 0.8 * trm_ref[...].astype(jnp.float32))
        diff = ais_ref[...].astype(jnp.float32) - aem_ref[...].astype(jnp.float32)

        # One MXU matmul: u = mc @ W.T + b  (W pre-transposed; bf16 operands, f32 acc).
        u = jnp.dot(mc.astype(matmul_dtype), w_ref[...],
                    preferred_element_type=jnp.float32) + b_ref[...]

        row = jnp.sum(u * diff, axis=-1, keepdims=True)            # (tile, 1) f32

        # Mask rows past the true batch size (ragged final tile reads undefined data).
        base = (p * pl.num_programs(1) + j) * tile
        rid = base + lax.broadcasted_iota(jnp.int32, row.shape, 0)
        cost = jnp.where(rid < B, jnp.maximum(row + margin, 0.0), 0.0)

        # Accumulate directly into the VMEM-resident per-partition output block.
        out_ref[...] += jnp.sum(cost, axis=0, keepdims=True)

    # Streamed (tile, D) blocks — last dim == full D (full-array exemption to (8,128)).
    row_spec = pl.BlockSpec((tile, D), lambda p, j: (p * tiles_per_part + j, 0))
    # Resident params: constant index_map + single buffering (halves their VMEM cost).
    w_spec = pl.BlockSpec((D, D), lambda p, j: (0, 0), pipeline_mode=pl.Buffered(1))
    b_spec = pl.BlockSpec((1, D), lambda p, j: (0, 0), pipeline_mode=pl.Buffered(1))
    # Per-partition accumulator block, (8,128)-aligned so stores are plain tiles.
    out_spec = pl.BlockSpec((1, 8, 128), lambda p, j: (p, 0, 0))

    in_itemsize = jnp.dtype(m.dtype).itemsize
    w_itemsize = jnp.dtype(matmul_dtype).itemsize

    # Explicit VMEM budget (4 double-buffered streamed tiles + single-buffered W/bias),
    # capped at 64 MiB so the same limit is valid on v5e/v6e (128 MiB) and v7x (64 MiB).
    vmem_est = (4 * 2 * tile * D * 4
                + D * D * w_itemsize + 2 * D * 4 + 2 * 8 * 128 * 4)
    vmem_limit = int(min(max(int(vmem_est * 1.5) + (4 << 20), 32 << 20), 64 << 20))

    cost_est = pl.CostEstimate(
        flops=2 * B * D * D + 5 * B * D,
        transcendentals=0,
        bytes_accessed=(4 * B * D * in_itemsize + D * D * w_itemsize
                        + D * 4 + n_par * 8 * 128 * 4),
    )

    partials = pl.pallas_call(
        kernel,
        out_shape=jax.ShapeDtypeStruct((n_par, 8, 128), jnp.float32),
        grid_spec=pltpu.PrefetchScalarGridSpec(
            num_scalar_prefetch=0,
            grid=grid,
            in_specs=[row_spec, row_spec, row_spec, row_spec, w_spec, b_spec],
            out_specs=out_spec,
        ),
        compiler_params=pltpu.CompilerParams(
            dimension_semantics=("parallel", "arbitrary"),
            vmem_limit_bytes=vmem_limit,
        ),
        cost_estimate=cost_est,
    )(m, tr_m, a_is_diag, a_em_diag, w_t, b_row)

    # Combine per-partition partial sums; result shape (1,) like cost_s.sum(0).
    return partials[:, 0, 0].sum().reshape(1).astype(jnp.float32)


def _reference(A_is_t, A_em_t, m, tr_m, weight, bias, margin=0.0):
    """Pure-JAX reference mirroring the PyTorch forward literally."""
    wm = m @ weight.T + bias
    wtr = tr_m @ weight.T + bias
    scores_is = (wm[:, None, :] * A_is_t).sum(-1)
    scores_em = (wm[:, None, :] * A_em_t).sum(-1)
    scores_is_trm = (wtr[:, None, :] * A_is_t).sum(-1)
    scores_em_trm = (wtr[:, None, :] * A_em_t).sum(-1)
    d_is = jnp.diag(scores_is)[:, None]
    d_em = jnp.diag(scores_em)[:, None]
    d_is_trm = jnp.diag(scores_is_trm)[:, None]
    d_em_trm = jnp.diag(scores_em_trm)[:, None]
    d_is_all = 0.2 * d_is + 0.8 * d_is_trm
    d_em_all = 0.8 * d_em_trm + 0.2 * d_em
    cost_s = jnp.maximum(margin + d_is_all - d_em_all, 0.0)
    return cost_s.sum(0)


def _make_inputs(key, B, D):
    k1, k2, k3, k4, k5, k6 = jax.random.split(key, 6)
    weight = jax.random.normal(k1, (D, D), dtype=jnp.float32) * 0.1
    bias = jax.random.normal(k2, (D,), dtype=jnp.float32) * 0.1
    m = jax.random.normal(k3, (B, D), dtype=jnp.float32)
    tr_m = jax.random.normal(k4, (B, D), dtype=jnp.float32)
    A_is_t = jax.random.normal(k5, (B, B, D), dtype=jnp.float32)
    A_em_t = jax.random.normal(k6, (B, B, D), dtype=jnp.float32)
    return weight, bias, m, tr_m, A_is_t, A_em_t


if __name__ == "__main__":
    key = jax.random.PRNGKey(0)
    k_a, k_b = jax.random.split(key)

    # --- Test 1: small, aligned shapes, f32 MXU path -> exact match vs. reference.
    B, D = 8, 32
    weight, bias, m, tr_m, A_is_t, A_em_t = _make_inputs(k_a, B, D)
    w_t, b_row = prepare_params(weight, bias, matmul_dtype=jnp.float32)   # one-time prep
    out = contrastive_loss_rec3(A_is_t, A_em_t, m, tr_m, w_t, b_row)
    out = jax.block_until_ready(out)
    ref = _reference(A_is_t, A_em_t, m, tr_m, weight, bias)
    assert out.shape == (1,)
    assert np.allclose(np.asarray(out), np.asarray(ref), rtol=1e-4, atol=1e-4), (out, ref)

    # --- Test 2: ragged batch (28 rows, tile=8), non-128 D, 2-way parallel batch
    #             split, bf16 MXU operands (looser tolerance).
    B, D = 28, 48
    weight, bias, m, tr_m, A_is_t, A_em_t = _make_inputs(k_b, B, D)
    w_t, b_row = prepare_params(weight, bias, matmul_dtype=jnp.bfloat16)  # one-time prep
    out = contrastive_loss_rec3(A_is_t, A_em_t, m, tr_m, w_t, b_row,
                                tile_b=8, num_batch_partitions=2)
    out = jax.block_until_ready(out)
    ref = _reference(A_is_t, A_em_t, m, tr_m, weight, bias)
    assert out.shape == (1,)
    assert np.allclose(np.asarray(out), np.asarray(ref), rtol=2e-2, atol=2e-1), (out, ref)

    print("KERNEL_OK")
</pallas_src>

<mosaic_0001>
module attributes {stable_mosaic.version = 11 : i64} {
  func.func @kernel(%arg0: i32, %arg1: i32, %arg2: memref<8x32xf32, #tpu.memory_space<vmem>>, %arg3: memref<8x32xf32, #tpu.memory_space<vmem>>, %arg4: memref<8x32xf32, #tpu.memory_space<vmem>>, %arg5: memref<8x32xf32, #tpu.memory_space<vmem>>, %arg6: memref<32x32xf32, #tpu.memory_space<vmem>>, %arg7: memref<1x32xf32, #tpu.memory_space<vmem>>, %arg8: memref<1x8x128xf32, #tpu.memory_space<vmem>>) attributes {dimension_semantics = [#tpu.dimension_semantics<parallel>, #tpu.dimension_semantics<arbitrary>], iteration_bounds = array<i64: 1, 1>, scalar_prefetch = 0 : i64, scratch_operands = 0 : i64, tpu.core_type = #tpu.core_type<tc>, window_params = [{transform_indices = @transform_0, window_bounds = array<i64: 8, 32>}, {transform_indices = @transform_1, window_bounds = array<i64: 8, 32>}, {transform_indices = @transform_2, window_bounds = array<i64: 8, 32>}, {transform_indices = @transform_3, window_bounds = array<i64: 8, 32>}, {pipeline_mode = #tpu.pipeline_mode<synchronous>, transform_indices = @transform_4, window_bounds = array<i64: 32, 32>}, {pipeline_mode = #tpu.pipeline_mode<synchronous>, transform_indices = @transform_5, window_bounds = array<i64: 1, 32>}, {transform_indices = @transform_6, window_bounds = array<i64: 1, 8, 128>}]} {
    %c0_i32 = arith.constant 0 : i32
    %0 = arith.cmpi eq, %arg1, %c0_i32 : i32
    %1 = arith.extui %0 : i1 to i32
    %c0_i32_0 = arith.constant 0 : i32
    %2 = arith.cmpi ne, %1, %c0_i32_0 : i32
    scf.if %2 {
      %cst_26 = arith.constant 0.000000e+00 : f32
      %42 = vector.broadcast %cst_26 : f32 to vector<1x8x128xf32>
      %c0_27 = arith.constant 0 : index
      %c0_28 = arith.constant 0 : index
      %c0_29 = arith.constant 0 : index
      %43 = vector.load %arg8[%c0_27, %c0_28, %c0_29] : memref<1x8x128xf32, #tpu.memory_space<vmem>>, vector<1x8x128xf32>
      tpu.vector_store %arg8[%c0_27, %c0_28, %c0_29], %42 {strides = array<i32>} : memref<1x8x128xf32, #tpu.memory_space<vmem>>, vector<1x8x128xf32>,
    } else {
    }
    %c0 = arith.constant 0 : index
    %c0_1 = arith.constant 0 : index
    %3 = vector.load %arg2[%c0, %c0_1] : memref<8x32xf32, #tpu.memory_space<vmem>>, vector<8x32xf32>
    %cst = arith.constant 2.000000e-01 : f32
    %4 = vector.broadcast %cst : f32 to vector<8x32xf32>
    %5 = arith.mulf %4, %3 : vector<8x32xf32>
    %c0_2 = arith.constant 0 : index
    %c0_3 = arith.constant 0 : index
    %6 = vector.load %arg3[%c0_2, %c0_3] : memref<8x32xf32, #tpu.memory_space<vmem>>, vector<8x32xf32>
    %cst_4 = arith.constant 8.000000e-01 : f32
    %7 = vector.broadcast %cst_4 : f32 to vector<8x32xf32>
    %8 = arith.mulf %7, %6 : vector<8x32xf32>
    %9 = arith.addf %5, %8 : vector<8x32xf32>
    %c0_5 = arith.constant 0 : index
    %c0_6 = arith.constant 0 : index
    %10 = vector.load %arg4[%c0_5, %c0_6] : memref<8x32xf32, #tpu.memory_space<vmem>>, vector<8x32xf32>
    %c0_7 = arith.constant 0 : index
    %c0_8 = arith.constant 0 : index
    %11 = vector.load %arg5[%c0_7, %c0_8] : memref<8x32xf32, #tpu.memory_space<vmem>>, vector<8x32xf32>
    %12 = arith.subf %10, %11 : vector<8x32xf32>
    %c0_9 = arith.constant 0 : index
    %c0_10 = arith.constant 0 : index
    %13 = vector.load %arg6[%c0_9, %c0_10] : memref<32x32xf32, #tpu.memory_space<vmem>>, vector<32x32xf32>
    %cst_11 = arith.constant dense<0.000000e+00> : vector<8x32xf32>
    %14 = tpu.matmul %9, %13, %cst_11 {dimension_numbers = #tpu.dot_dimension_numbers<[1], [0], [0], [1], [0, 0, 1, 1], [], []>} : vector<8x32xf32>, vector<32x32xf32>, vector<8x32xf32> -> vector<8x32xf32>
    %c0_12 = arith.constant 0 : index
    %c0_13 = arith.constant 0 : index
    %15 = vector.load %arg7[%c0_12, %c0_13] : memref<1x32xf32, #tpu.memory_space<vmem>>, vector<1x32xf32>
    %16 = vector.broadcast %15 : vector<1x32xf32> to vector<8x32xf32>
    %17 = arith.addf %14, %16 : vector<8x32xf32>
    %18 = arith.mulf %17, %12 : vector<8x32xf32>
    %cst_14 = arith.constant dense<0.000000e+00> : vector<8xf32>
    %19 = vector.multi_reduction <add>, %18, %cst_14 [1] : vector<8x32xf32> to vector<8xf32>
    %20 = vector.shape_cast %19 : vector<8xf32> to vector<8x1xf32>
    %c1_i32 = arith.constant 1 : i32
    %21 = arith.muli %arg0, %c1_i32 : i32
    %22 = arith.addi %21, %arg1 : i32
    %c8_i32 = arith.constant 8 : i32
    %23 = arith.muli %22, %c8_i32 : i32
    %24 = tpu.iota {dimensions = array<i32: 0>} : vector<8x1xi32>
    %25 = vector.broadcast %23 : i32 to vector<8x1xi32>
    %26 = arith.addi %25, %24 : vector<8x1xi32>
    %c8_i32_15 = arith.constant 8 : i32
    %27 = vector.broadcast %c8_i32_15 : i32 to vector<8x1xi32>
    %28 = arith.cmpi slt, %26, %27 : vector<8x1xi32>
    %cst_16 = arith.constant 0.000000e+00 : f32
    %29 = vector.broadcast %cst_16 : f32 to vector<8x1xf32>
    %30 = arith.addf %20, %29 : vector<8x1xf32>
    %cst_17 = arith.constant 0.000000e+00 : f32
    %31 = vector.broadcast %cst_17 : f32 to vector<8x1xf32>
    %32 = arith.maximumf %30, %31 : vector<8x1xf32>
    %cst_18 = arith.constant 0.000000e+00 : f32
    %33 = vector.broadcast %cst_18 : f32 to vector<8x1xf32>
    %34 = arith.select %28, %32, %33 : vector<8x1xi1>, vector<8x1xf32>
    %c0_19 = arith.constant 0 : index
    %c0_20 = arith.constant 0 : index
    %c0_21 = arith.constant 0 : index
    %35 = vector.load %arg8[%c0_19, %c0_20, %c0_21] : memref<1x8x128xf32, #tpu.memory_space<vmem>>, vector<1x8x128xf32>
    %cst_22 = arith.constant dense<0.000000e+00> : vector<1xf32>
    %36 = vector.multi_reduction <add>, %34, %cst_22 [0] : vector<8x1xf32> to vector<1xf32>
    %37 = vector.shape_cast %36 : vector<1xf32> to vector<1x1xf32>
    %38 = vector.shape_cast %37 : vector<1x1xf32> to vector<1x1x1xf32>
    %39 = vector.broadcast %38 : vector<1x1x1xf32> to vector<1x8x128xf32>
    %40 = arith.addf %35, %39 : vector<1x8x128xf32>
    %c0_23 = arith.constant 0 : index
    %c0_24 = arith.constant 0 : index
    %c0_25 = arith.constant 0 : index
    %41 = vector.load %arg8[%c0_23, %c0_24, %c0_25] : memref<1x8x128xf32, #tpu.memory_space<vmem>>, vector<1x8x128xf32>
    tpu.vector_store %arg8[%c0_23, %c0_24, %c0_25], %40 {strides = array<i32>} : memref<1x8x128xf32, #tpu.memory_space<vmem>>, vector<1x8x128xf32>,
    return
  }
  func.func @transform_0(%arg0: i32, %arg1: i32) -> (i32, i32) {
    %c1_i32 = arith.constant 1 : i32
    %0 = arith.muli %arg0, %c1_i32 : i32
    %1 = arith.addi %0, %arg1 : i32
    %c0_i32 = arith.constant 0 : i32
    %c0_i32_0 = arith.constant 0 : i32
    return %1, %c0_i32 : i32, i32
  }
  func.func @transform_1(%arg0: i32, %arg1: i32) -> (i32, i32) {
    %c1_i32 = arith.constant 1 : i32
    %0 = arith.muli %arg0, %c1_i32 : i32
    %1 = arith.addi %0, %arg1 : i32
    %c0_i32 = arith.constant 0 : i32
    %c0_i32_0 = arith.constant 0 : i32
    return %1, %c0_i32 : i32, i32
  }
  func.func @transform_2(%arg0: i32, %arg1: i32) -> (i32, i32) {
    %c1_i32 = arith.constant 1 : i32
    %0 = arith.muli %arg0, %c1_i32 : i32
    %1 = arith.addi %0, %arg1 : i32
    %c0_i32 = arith.constant 0 : i32
    %c0_i32_0 = arith.constant 0 : i32
    return %1, %c0_i32 : i32, i32
  }
  func.func @transform_3(%arg0: i32, %arg1: i32) -> (i32, i32) {
    %c1_i32 = arith.constant 1 : i32
    %0 = arith.muli %arg0, %c1_i32 : i32
    %1 = arith.addi %0, %arg1 : i32
    %c0_i32 = arith.constant 0 : i32
    %c0_i32_0 = arith.constant 0 : i32
    return %1, %c0_i32 : i32, i32
  }
  func.func @transform_4(%arg0: i32, %arg1: i32) -> (i32, i32) {
    %c0_i32 = arith.constant 0 : i32
    %c0_i32_0 = arith.constant 0 : i32
    %c0_i32_1 = arith.constant 0 : i32
    return %c0_i32, %c0_i32_0 : i32, i32
  }
  func.func @transform_5(%arg0: i32, %arg1: i32) -> (i32, i32) {
    %c0_i32 = arith.constant 0 : i32
    %c0_i32_0 = arith.constant 0 : i32
    %c0_i32_1 = arith.constant 0 : i32
    return %c0_i32, %c0_i32_0 : i32, i32
  }
  func.func @transform_6(%arg0: i32, %arg1: i32) -> (i32, i32, i32) {
    %c0_i32 = arith.constant 0 : i32
    %c0_i32_0 = arith.constant 0 : i32
    %c0_i32_1 = arith.constant 0 : i32
    return %arg0, %c0_i32, %c0_i32_0 : i32, i32, i32
  }
}

</mosaic_0001>

<llo_original>
// kernel: tpu_custom_call.1
$region0: #{tpu_custom_call.1}
  #allocation0 [shape = 'u32[]', space=smem, size = 0x4, offset = 0x4, fixed_abs, tag = 'smem constant byte address 0x4 - core index']
  #allocation1 [shape = 'u32[144,128]{1,0:T(1,128)}', space=vmem, size = 0x12000, scoped, tag = 'internal scratch']
  %s0 = inlined_call_operand.hbm [shape: f32[8,32], index: 0, kind: input, shape index: {}]
  %s1 = inlined_call_operand.hbm [shape: f32[8,32], index: 1, kind: input, shape index: {}]
  %s2 = inlined_call_operand.hbm [shape: f32[8,32], index: 2, kind: input, shape index: {}]
  %s3 = inlined_call_operand.vmem [shape: f32[8,32], index: 3, kind: input, shape index: {}]
  %s4 = inlined_call_operand.hbm [shape: f32[32,32], index: 4, kind: input, shape index: {}]
  %s5 = inlined_call_operand.vmem [shape: f32[1,32], index: 5, kind: input, shape index: {}]
  %s6 = inlined_call_operand.hbm [shape: f32[1,8,128], index: 6, kind: output, shape index: {}]
  %s7 = sld [smem:[#allocation0]]
  $region54: #{tpu_custom_call.1} parent=0
    _
  %s9 = ssub.s32 1, %s7
  %s10 = scalar_select 0, %s9, %s7
  $region1: #{tpu_custom_call.1} parent=0
    #allocation2 [shape = 'u8[4096]{0}', space=vmem, size = 0x1000, scoped, tag = 'input window, operand 0, single buffered']
    #allocation3 [shape = 's32[1]{0}', space=sflag, size = 0x4, scoped, tag = 'scoped memory for tpu_custom_call.1']
    #allocation4 [shape = 's32[1]{0}', space=sflag, size = 0x4, scoped, tag = 'scoped memory for tpu_custom_call.1']
    #allocation5 [shape = 'u8[4096]{0}', space=vmem, size = 0x1000, scoped, tag = 'input window, operand 1, single buffered']
    #allocation6 [shape = 's32[1]{0}', space=sflag, size = 0x4, scoped, tag = 'scoped memory for tpu_custom_call.1']
    #allocation7 [shape = 'u8[4096]{0}', space=vmem, size = 0x1000, scoped, tag = 'input window, operand 2, single buffered']
    #allocation8 [shape = 'u8[16384]{0}', space=vmem, size = 0x4000, scoped, tag = 'input window, operand 4, single buffered']
    #allocation9 [shape = 's32[1]{0}', space=sflag, size = 0x4, scoped, tag = 'scoped memory for tpu_custom_call.1']
    #allocation10 [shape = 'u8[4096]{0}', space=vmem, size = 0x1000, scoped, tag = 'output window, operand 0, single buffered']
    %11 = vsyncpa [#allocation3], 0
    %12 = vsyncpa [#allocation6], 0
    %13 = vsyncpa [#allocation9], 0
    %14 = vsyncpa [#allocation4], 0
    // Predicated region
    $region2: #{tpu_custom_call.1} parent=1 // pred_check
      _
    $region3: #{tpu_custom_call.1} parent=1 // pred_check_branch
      %16 = sbr.rel (0) target = $region5
    $region4: #{tpu_custom_call.1} parent=1 // pred_region
      %s17 = sadd.s32 0, 0
      %s19 = ssub.s32 128, 128
      %20 = vsyncadd [#allocation3], %s19
      %s21 = smul.addr %s17, 128
      %s22 = scalar_lea.hbm %s0, %s21
      %s24 = sshll.u32 [#allocation2], 4
      %s25 = int_to_ptr.vmem [resolvable:$true] %s24
      %27 = dma.hbm_to_vmem [thread:$0]  %s22, 128, %s25, [#allocation3]
    $region5: #{tpu_custom_call.1} parent=1 // pred_fallthru
      _
    // Predicated region
    $region6: #{tpu_custom_call.1} parent=1 // pred_check
      _
    $region7: #{tpu_custom_call.1} parent=1 // pred_check_branch
      %29 = sbr.rel (0) target = $region9
    $region8: #{tpu_custom_call.1} parent=1 // pred_region
      %s30 = sadd.s32 0, 0
      %s32 = ssub.s32 128, 128
      %33 = vsyncadd [#allocation6], %s32
      %s34 = smul.addr %s30, 128
      %s35 = scalar_lea.hbm %s1, %s34
      %s37 = sshll.u32 [#allocation5], 4
      %s38 = int_to_ptr.vmem [resolvable:$true] %s37
      %40 = dma.hbm_to_vmem [thread:$0]  %s35, 128, %s38, [#allocation6]
    $region9: #{tpu_custom_call.1} parent=1 // pred_fallthru
      _
    // Predicated region
    $region10: #{tpu_custom_call.1} parent=1 // pred_check
      _
    $region11: #{tpu_custom_call.1} parent=1 // pred_check_branch
      %42 = sbr.rel (0) target = $region13
    $region12: #{tpu_custom_call.1} parent=1 // pred_region
      %s43 = sadd.s32 0, 0
      %s45 = ssub.s32 128, 128
      %46 = vsyncadd [#allocation6], %s45
      %s47 = smul.addr %s43, 128
      %s48 = scalar_lea.hbm %s2, %s47
      %s50 = sshll.u32 [#allocation7], 4
      %s51 = int_to_ptr.vmem [resolvable:$true] %s50
      %53 = dma.hbm_to_vmem [thread:$0]  %s48, 128, %s51, [#allocation6]
    $region13: #{tpu_custom_call.1} parent=1 // pred_fallthru
      _
    // Predicated region
    $region14: #{tpu_custom_call.1} parent=1 // pred_check
      _
    $region15: #{tpu_custom_call.1} parent=1 // pred_check_branch
      %55 = sbr.rel (0) target = $region17
    $region16: #{tpu_custom_call.1} parent=1 // pred_region
      %s56 = sadd.s32 0, 0
      %p57 = scmp.lt.s32.totalorder %s56, 0
      %s58 = scalar_select %p57, %s56, 0
      %s59 = smul.addr %s58, 8
      %s60 = scalar_lea.vmem %s3, %s59
      %s61 = sadd.s32 0, 0
    $region17: #{tpu_custom_call.1} parent=1 // pred_fallthru
      _
    // Predicated region
    $region18: #{tpu_custom_call.1} parent=1 // pred_check
      _
    $region19: #{tpu_custom_call.1} parent=1 // pred_check_branch
      %63 = sbr.rel (0) target = $region21
    $region20: #{tpu_custom_call.1} parent=1 // pred_region
      %s65 = ssub.s32 512, 512
      %66 = vsyncadd [#allocation9], %s65
      %s67 = sshll.u32 [#allocation8], 4
      %s68 = int_to_ptr.vmem [resolvable:$true] %s67
      %73 = dma.hbm_to_vmem [thread:$0]  %s4, 512, %s68, [#allocation9], 128, 128, 8
    $region21: #{tpu_custom_call.1} parent=1 // pred_fallthru
      _
    // Predicated region
    $region22: #{tpu_custom_call.1} parent=1 // pred_check
      _
    $region23: #{tpu_custom_call.1} parent=1 // pred_check_branch
      %75 = sbr.rel (0) target = $region25
    $region24: #{tpu_custom_call.1} parent=1 // pred_region
      _
    $region25: #{tpu_custom_call.1} parent=1 // pred_fallthru
      _
    // Predicated region
    $region26: #{tpu_custom_call.1} parent=1 // pred_check
      _
    $region27: #{tpu_custom_call.1} parent=1 // pred_check_branch
      %77 = sbr.rel (0) target = $region29
    $region28: #{tpu_custom_call.1} parent=1 // pred_region
      %78 = dma.done [#allocation3], 128
    $region29: #{tpu_custom_call.1} parent=1 // pred_fallthru
      _
    // Predicated region
    $region30: #{tpu_custom_call.1} parent=1 // pred_check
      _
    $region31: #{tpu_custom_call.1} parent=1 // pred_check_branch
      %80 = sbr.rel (0) target = $region33
    $region32: #{tpu_custom_call.1} parent=1 // pred_region
      %81 = dma.done [#allocation6], 128
    $region33: #{tpu_custom_call.1} parent=1 // pred_fallthru
      _
    // Predicated region
    $region34: #{tpu_custom_call.1} parent=1 // pred_check
      _
    $region35: #{tpu_custom_call.1} parent=1 // pred_check_branch
      %83 = sbr.rel (0) target = $region37
    $region36: #{tpu_custom_call.1} parent=1 // pred_region
      %84 = dma.done [#allocation6], 128
    $region37: #{tpu_custom_call.1} parent=1 // pred_fallthru
      _
    // Predicated region
    $region38: #{tpu_custom_call.1} parent=1 // pred_check
      _
    $region39: #{tpu_custom_call.1} parent=1 // pred_check_branch
      %86 = sbr.rel (0) target = $region41
    $region40: #{tpu_custom_call.1} parent=1 // pred_region
      %87 = dma.done [#allocation9], 512
    $region41: #{tpu_custom_call.1} parent=1 // pred_fallthru
      _
    %s88 = sadd.s32 0, 0
    %p89 = scmp.lt.s32.totalorder %s88, 0
    %s90 = scalar_select %p89, %s88, 0
    %s91 = smul.addr %s90, 8
    %s92 = scalar_lea.vmem %s3, %s91
    %s93 = sadd.s32 0, 0
    %s94 = sadd.s32 0, 0
    %s95 = sadd.s32 0, 0
    %s96 = sadd.s32 0, 0
    %p97 = scmp.lt.s32.totalorder %s96, 0
    %s98 = scalar_select %p97, %s96, 0
    %s99 = smul.addr %s98, 8
    %s100 = scalar_lea.vmem %s3, %s99
    %s101 = sadd.s32 0, 0
    %p102 = scmp.eq.s32.totalorder 0, 0
    // Predicated region
    $region42: #{tpu_custom_call.1} parent=1 // pred_check
      %p103 = pneg %p102
    $region43: #{tpu_custom_call.1} parent=1 // pred_check_branch
      %105 = sbr.rel (%p103) target = $region45
    $region44: #{tpu_custom_call.1} parent=1 // pred_region
      %106 = vst [vmem:[#allocation10] sm:$0xff] 0.0
    $region45: #{tpu_custom_call.1} parent=1 // pred_fallthru
      _
    %v107 = vld [vmem:[#allocation2] sm:$0xff]
    %v108 = vmul.f32 %v107, 0.2
    %v109 = vld [vmem:[#allocation5] sm:$0xff]
    %v110 = vmul.f32 %v109, 0.8
    %v111 = vadd.f32 %v108, %v110
    %v112 = vld [vmem:[#allocation7] sm:$0xff]
    %v113 = vld [vmem:[%s100] sm:$0xff]
    %v114 = vsub.f32 %v112, %v113
    %v115 = vld [vmem:[#allocation8] sm:$0xff]
    %v116 = vld [vmem:[#allocation8 + $0x8] sm:$0xff]
    %v117 = vld [vmem:[#allocation8 + $0x10] sm:$0xff]
    %v118 = vld [vmem:[#allocation8 + $0x18] sm:$0xff]
    %v119 = vld [vmem:[%s5] sm:$0x1]
    %v121 = vlaneseq
    %v122 = vshrl.u32 %v121, 7
    %v123 = vsub.s32 0, %v122
    %v124 = vrot.slane %v119, %v123
    %vm126 = vcmask 261120
    %v128 = vsel %vm126, %v111, 0
    %130 = vmatprep.subr.mxu0 0.0
    %131 = vmatpush1.msra.mxu0 %v115
    %132 = vmatprep.subr.mxu0 0.0
    %133 = vmatpush1.msra.mxu0 %v116
    %134 = vmatprep.subr.mxu0 0.0
    %135 = vmatpush1.msra.mxu0 %v117
    %136 = vmatprep.subr.mxu0 0.0
    %137 = vmatpush1.msra.mxu0 %v118
    %138 = vmatprep.subr.mxu0 0.0
    %139 = vmatpush1.msra.mxu0 0.0
    %140 = vmatprep.subr.mxu0 0.0
    %141 = vmatpush1.msra.mxu0 0.0
    %142 = vmatprep.subr.mxu0 0.0
    %143 = vmatpush1.msra.mxu0 0.0
    %144 = vmatprep.subr.mxu0 0.0
    %145 = vmatpush1.msra.mxu0 0.0
    %146 = vmatprep.subr.mxu0 0.0
    %147 = vmatpush1.msra.mxu0 0.0
    %148 = vmatprep.subr.mxu0 0.0
    %149 = vmatpush1.msra.mxu0 0.0
    %150 = vmatprep.subr.mxu0 0.0
    %151 = vmatpush1.msra.mxu0 0.0
    %152 = vmatprep.subr.mxu0 0.0
    %153 = vmatpush1.msra.mxu0 0.0
    %154 = vmatprep.subr.mxu0 0.0
    %155 = vmatpush1.msra.mxu0 0.0
    %156 = vmatprep.subr.mxu0 0.0
    %157 = vmatpush1.msra.mxu0 0.0
    %158 = vmatprep.subr.mxu0 0.0
    %159 = vmatpush1.msra.mxu0 0.0
    %160 = vmatprep.subr.mxu0 0.0
    %161 = vmatpush1.msra.mxu0 0.0
    %162 = vmatprep.subr.mxu0 0.0
    %163 = vmatpush1.msra.mxu0 0.0
    %164 = vmatprep.subr.mxu0 0.0
    %165 = vmatpush1.msra.mxu0 0.0
    %166 = vmatprep.subr.mxu0 0.0
    %167 = vmatpush1.msra.mxu0 0.0
    %168 = vmatprep.subr.mxu0 0.0
    %169 = vmatpush1.msra.mxu0 0.0
    %170 = vmatprep.subr.mxu0 0.0
    %171 = vmatpush1.msra.mxu0 0.0
    %172 = vmatprep.subr.mxu0 0.0
    %173 = vmatpush1.msra.mxu0 0.0
    %174 = vmatprep.subr.mxu0 0.0
    %175 = vmatpush1.msra.mxu0 0.0
    %176 = vmatprep.subr.mxu0 0.0
    %177 = vmatpush1.msra.mxu0 0.0
    %178 = vmatprep.subr.mxu0 0.0
    %179 = vmatpush1.msra.mxu0 0.0
    %180 = vmatprep.subr.mxu0 0.0
    %181 = vmatpush1.msra.mxu0 0.0
    %182 = vmatprep.subr.mxu0 0.0
    %183 = vmatpush1.msra.mxu0 0.0
    %184 = vmatprep.subr.mxu0 0.0
    %185 = vmatpush1.msra.mxu0 0.0
    %186 = vmatprep.subr.mxu0 0.0
    %187 = vmatpush1.msra.mxu0 0.0
    %188 = vmatprep.subr.mxu0 0.0
    %189 = vmatpush1.msra.mxu0 0.0
    %190 = vmatprep.subr.mxu0 0.0
    %191 = vmatpush1.msra.mxu0 0.0
    %192 = vmatprep.subr.mxu0 0.0
    %193 = vmatpush1.msra.mxu0 0.0
    %194 = vmatprep.mubr.f32.mxu0 0.0
    %195 = vmatmul.mubr.f32.gmra.mrb[0].mxu0 %v128
    %v196 = vpop.f32.mrb[0].mxu0
    %v197 = vadd.f32 %v124, %v196
    %v198 = vpop.f32.mrb[0].mxu0
    %199 = vdwg.mxu0
    %v200 = vmul.f32 %v197, %v114
    %v201 = vsel %vm126, %v200, 0.0
    %202 = vadd.xlane.f32.xlu0 %v201
    %v203 = vpop.xlane.xlu0 %202
    %s204 = sadd.s32 0, 0
    %s205 = smul.u32 %s204, 8
    %v206 = vlaneseq
    %v207 = vshrl.u32 %v206, 7
    %v208 = vstv %s205
    %v209 = vadd.s32 %v208, %v207
    %vm210 = vcmp.lt.s32.totalorder %v209, 8
    %v211 = vadd.f32 %v203, 0.0
    %v212 = vmax.f32 %v211, 0.0
    %v213 = vsel %vm210, %v212, 0.0
    %v214 = vld [vmem:[#allocation10] sm:$0xff]
    %v215 = vrot.slane %v213, 4
    %v216 = vadd.f32 %v213, %v215
    %v217 = vrot.slane %v216, 2
    %v218 = vadd.f32 %v216, %v217
    %v219 = vrot.slane %v218, 1
    %v220 = vadd.f32 %v218, %v219
    %v221 = vadd.f32 %v214, %v220
    %222 = vst [vmem:[#allocation10] sm:$0xff] %v221
    // Predicated region
    $region46: #{tpu_custom_call.1} parent=1 // pred_check
      _
    $region47: #{tpu_custom_call.1} parent=1 // pred_check_branch
      %224 = sbr.rel (0) target = $region49
    $region48: #{tpu_custom_call.1} parent=1 // pred_region
      %s226 = ssub.s32 128, 128
      %227 = vsyncadd [#allocation4], %s226
      %s229 = sshll.u32 [#allocation10], 4
      %s230 = int_to_ptr.vmem [resolvable:$true] %s229
      %232 = dma.vmem_to_hbm [thread:$0]  %s230, 128, %s6, [#allocation4]
    $region49: #{tpu_custom_call.1} parent=1 // pred_fallthru
      _
    // Predicated region
    $region50: #{tpu_custom_call.1} parent=1 // pred_check
      _
    $region51: #{tpu_custom_call.1} parent=1 // pred_check_branch
      %234 = sbr.rel (0) target = $region53
    $region52: #{tpu_custom_call.1} parent=1 // pred_region
      %235 = dma.done [#allocation4], 128
    $region53: #{tpu_custom_call.1} parent=1 // pred_fallthru
      _
    %236 = vsyncpa [#allocation3], 1
    %237 = vsyncpa [#allocation6], 1
    %238 = vsyncpa [#allocation9], 1
    %239 = vsyncpa [#allocation4], 1

</llo_original>
